<compile_context>
chip_gen: v7x
topology: tpu7x:2x2x1
jax: 0.10.0
libtpu: 0.0.40
codegen_flags: <defaults>
</compile_context>

<pallas_src>
from functools import partial

import jax
import jax.numpy as jnp
from jax import lax
from jax.experimental import pallas as pl
from jax.experimental.pallas import tpu as pltpu


def _sorting_network(n):
    """Comparator pairs for an ascending sort of n elements."""
    if n <= 1:
        return []
    if n == 2:
        return [(0, 1)]
    if n == 4:  # optimal 5-comparator network
        return [(0, 1), (2, 3), (0, 2), (1, 3), (1, 2)]
    pairs = []  # generic odd-even transposition (correct for any n)
    for sweep in range(n):
        for i in range(sweep % 2, n - 1, 2):
            pairs.append((i, i + 1))
    return pairs


def _wkp_kernel(p_ref, w_ref, b_ref, o_ref, s_ref, *, KK, C, TC):
    # p_ref: (KK*C, TN)  w_ref: (O, KK*C)  b_ref: (O, 1) f32
    # o_ref: (O, TN)     s_ref: (KK*C, TC) VMEM scratch
    TN = p_ref.shape[1]
    w = w_ref[...]                      # tiny, resident across the grid
    bvec = b_ref[...]                   # (O, 1) f32

    for ci in range(TN // TC):          # static, fully unrolled lane-chunk loop
        c0 = ci * TC
        # one slab per window position m: the values at rank-unsorted slot m
        cols = [p_ref[m * C:(m + 1) * C, c0:c0 + TC] for m in range(KK)]

        # ascending sort over the KK window positions (compare-exchange net)
        for i, j in _sorting_network(KK):
            lo = jnp.minimum(cols[i], cols[j])
            hi = jnp.maximum(cols[i], cols[j])
            cols[i], cols[j] = lo, hi

        # write sorted slabs into the scratch (rows m*C:(m+1)*C) -- no
        # concatenate repack, caps vreg live ranges (review option (a))
        for m in range(KK):
            s_ref[m * C:(m + 1) * C, :] = cols[m]

        # Conv2d(stride=k) over folded sorted blocks == one fused matmul
        acc = jnp.dot(w, s_ref[...], preferred_element_type=jnp.float32)
        o_ref[:, c0:c0 + TC] = (acc + bvec).astype(o_ref.dtype)


def weighted_maxk_pooling(x, weight, bias, *, kernel_size, stride, padding,
                          tn_max=8192):
    """x: (B, C, H, W), weight: (O, C, k, k), bias: (O,) -> (B, O, Lh, Lw)."""
    B, C, H, W = x.shape
    O = weight.shape[0]
    k = kernel_size
    KK = k * k
    R = KK * C
    Lh = (H + 2 * padding - k) // stride + 1
    Lw = (W + 2 * padding - k) // stride + 1
    Ntot = B * Lh * Lw

    # ---- lane tiling: big blocks, but >=2 parallel blocks when possible so
    # both v7x TensorCores get work; TN always a multiple of 128.
    n128 = pl.cdiv(Ntot, 128)
    max_groups = max(1, tn_max // 128)
    if n128 <= max_groups:
        groups = pl.cdiv(n128, 2) if n128 >= 2 else 1
    else:
        groups = max_groups
    TN = groups * 128
    grid_n = pl.cdiv(Ntot, TN)
    Npad = grid_n * TN

    # in-kernel lane chunk (caps vreg pressure at large TN)
    if TN % 512 == 0:
        TC = 512
    elif TN % 256 == 0:
        TC = 256
    else:
        TC = 128

    # ---- build patches lane-dense: rows m*C + c, lanes b*Lh*Lw + i*Lw + j
    # (single XLA relayout; see TODO at top about fusing this into the kernel)
    xp = jnp.pad(x, ((0, 0), (0, 0), (padding, padding), (padding, padding)))
    slabs = []
    for u in range(k):
        for v in range(k):
            slabs.append(xp[:, :, u:u + stride * Lh:stride,
                             v:v + stride * Lw:stride])     # (B, C, Lh, Lw)
    p = jnp.stack(slabs, axis=0)                             # (KK, B, C, Lh, Lw)
    p = p.transpose(0, 2, 1, 3, 4).reshape(R, Ntot)          # (KK*C, Ntot)
    if Npad != Ntot:
        p = jnp.pad(p, ((0, 0), (0, Npad - Ntot)))

    # weight re-layout: w_k[o, m*C + c] = weight[o, c, m // k, m % k]
    w_k = jnp.transpose(weight.reshape(O, C, KK), (0, 2, 1)).reshape(O, R)
    w_k = w_k.astype(x.dtype)
    b_k = bias.reshape(O, 1).astype(jnp.float32)

    kernel = partial(_wkp_kernel, KK=KK, C=C, TC=TC)

    out_flat = pl.pallas_call(
        kernel,
        out_shape=jax.ShapeDtypeStruct((O, Npad), x.dtype),
        grid_spec=pltpu.PrefetchScalarGridSpec(
            num_scalar_prefetch=0,
            grid=(grid_n,),
            in_specs=[
                pl.BlockSpec((R, TN), lambda t: (0, t)),     # patches (lane tiles)
                pl.BlockSpec((O, R), lambda t: (0, 0)),      # weight (resident)
                pl.BlockSpec((O, 1), lambda t: (0, 0)),      # bias
            ],
            out_specs=pl.BlockSpec((O, TN), lambda t: (0, t)),
            scratch_shapes=[pltpu.VMEM((R, TC), x.dtype)],
        ),
        compiler_params=pltpu.CompilerParams(
            dimension_semantics=("parallel",)),
    )(p, w_k, b_k)

    # crop the lane-pad tail (bias-only garbage) and restore NCHW
    out = out_flat[:, :Ntot].reshape(O, B, Lh, Lw).transpose(1, 0, 2, 3)
    return out


def _reference(x, weight, bias, k, stride, padding):
    """Independent pure-JAX mirror of the PyTorch forward pass (non-circular)."""
    B, C, H, W = x.shape
    xp = jnp.pad(x, ((0, 0), (0, 0), (padding, padding), (padding, padding)))
    Lh = (H + 2 * padding - k) // stride + 1
    Lw = (W + 2 * padding - k) // stride + 1
    # F.unfold: rows ordered c*k*k + u*k + v (channel-major), cols i*Lw + j
    rows = []
    for c in range(C):
        for u in range(k):
            for v in range(k):
                rows.append(xp[:, c, u:u + stride * Lh:stride,
                               v:v + stride * Lw:stride].reshape(B, Lh * Lw))
    unf = jnp.stack(rows, axis=1)                        # (B, C*k*k, L)
    chunks = jnp.split(unf, C, axis=1)                   # torch.chunk(dim=1)
    cat = jnp.concatenate(chunks, axis=2)                # (B, k*k, C*L)
    srt = jnp.sort(cat, axis=1)                          # torch.sort(dim=1)
    chunks2 = jnp.split(srt, C, axis=2)                  # torch.chunk(dim=2)
    back = jnp.concatenate(chunks2, axis=1)              # (B, C*k*k, L)
    # F.fold(kernel=k, stride=k): folded[b,c,i*k+u,j*k+v] = back[b, c*k*k+u*k+v, i*Lw+j]
    folded = back.reshape(B, C, k, k, Lh, Lw).transpose(0, 1, 4, 2, 5, 3)
    folded = folded.reshape(B, C, Lh * k, Lw * k)
    out = lax.conv_general_dilated(
        folded, weight, window_strides=(k, k), padding="VALID",
        dimension_numbers=("NCHW", "OIHW", "NCHW"),
        precision=lax.Precision.HIGHEST)
    return out + bias[None, :, None, None]


if __name__ == "__main__":
    # Module hyperparameters: stride=2, in_channels=4, out_channels=8,
    # kernel_size=2, padding=1
    B, C, H, W = 2, 4, 16, 16
    O, k, stride, padding = 8, 2, 2, 1

    key = jax.random.PRNGKey(0)
    k1, k2, k3 = jax.random.split(key, 3)
    x = jax.random.normal(k1, (B, C, H, W), jnp.float32)
    weight = jax.random.normal(k2, (O, C, k, k), jnp.float32) * 0.1
    bias = jax.random.normal(k3, (O,), jnp.float32) * 0.1

    out = weighted_maxk_pooling(
        x, weight, bias, kernel_size=k, stride=stride, padding=padding
    )
    out = jax.block_until_ready(out)

    ref = _reference(x, weight, bias, k, stride, padding)
    assert out.shape == ref.shape, (out.shape, ref.shape)
    assert jnp.allclose(out, ref, atol=1e-3, rtol=1e-3), "mismatch vs reference"

    print("KERNEL_OK")
</pallas_src>

<mosaic_0001>
module attributes {stable_mosaic.version = 11 : i64} {
  func.func @_wkp_kernel(%arg0: i32, %arg1: memref<16x128xf32, #tpu.memory_space<vmem>>, %arg2: memref<8x16xf32, #tpu.memory_space<vmem>>, %arg3: memref<8x1xf32, #tpu.memory_space<vmem>>, %arg4: memref<8x128xf32, #tpu.memory_space<vmem>>, %arg5: memref<16x128xf32, #tpu.memory_space<vmem>>) attributes {dimension_semantics = [#tpu.dimension_semantics<parallel>], iteration_bounds = array<i64: 2>, scalar_prefetch = 0 : i64, scratch_operands = 1 : i64, tpu.core_type = #tpu.core_type<tc>, window_params = [{transform_indices = @transform_0, window_bounds = array<i64: 16, 128>}, {pipeline_mode = #tpu.pipeline_mode<synchronous>, transform_indices = @transform_1, window_bounds = array<i64: 8, 16>}, {pipeline_mode = #tpu.pipeline_mode<synchronous>, transform_indices = @transform_2, window_bounds = array<i64: 8, 1>}, {transform_indices = @transform_3, window_bounds = array<i64: 8, 128>}]} {
    %c0 = arith.constant 0 : index
    %c0_0 = arith.constant 0 : index
    %0 = vector.load %arg2[%c0, %c0_0] : memref<8x16xf32, #tpu.memory_space<vmem>>, vector<8x16xf32>
    %c0_1 = arith.constant 0 : index
    %c0_2 = arith.constant 0 : index
    %1 = vector.load %arg3[%c0_1, %c0_2] : memref<8x1xf32, #tpu.memory_space<vmem>>, vector<8x1xf32>
    %c0_3 = arith.constant 0 : index
    %c0_4 = arith.constant 0 : index
    %2 = vector.load %arg1[%c0_3, %c0_4] : memref<16x128xf32, #tpu.memory_space<vmem>>, vector<4x128xf32>
    %c4 = arith.constant 4 : index
    %c0_5 = arith.constant 0 : index
    %3 = vector.load %arg1[%c4, %c0_5] : memref<16x128xf32, #tpu.memory_space<vmem>>, vector<4x128xf32>
    %c8 = arith.constant 8 : index
    %c0_6 = arith.constant 0 : index
    %4 = vector.load %arg1[%c8, %c0_6] : memref<16x128xf32, #tpu.memory_space<vmem>>, vector<4x128xf32>
    %c12 = arith.constant 12 : index
    %c0_7 = arith.constant 0 : index
    %5 = vector.load %arg1[%c12, %c0_7] : memref<16x128xf32, #tpu.memory_space<vmem>>, vector<4x128xf32>
    %6 = arith.minimumf %2, %3 : vector<4x128xf32>
    %7 = arith.maximumf %2, %3 : vector<4x128xf32>
    %8 = arith.minimumf %4, %5 : vector<4x128xf32>
    %9 = arith.maximumf %4, %5 : vector<4x128xf32>
    %10 = arith.minimumf %6, %8 : vector<4x128xf32>
    %11 = arith.maximumf %6, %8 : vector<4x128xf32>
    %12 = arith.minimumf %7, %9 : vector<4x128xf32>
    %13 = arith.maximumf %7, %9 : vector<4x128xf32>
    %14 = arith.minimumf %12, %11 : vector<4x128xf32>
    %15 = arith.maximumf %12, %11 : vector<4x128xf32>
    %c0_8 = arith.constant 0 : index
    %c0_9 = arith.constant 0 : index
    %16 = vector.load %arg5[%c0_8, %c0_9] : memref<16x128xf32, #tpu.memory_space<vmem>>, vector<4x128xf32>
    tpu.vector_store %arg5[%c0_8, %c0_9], %10 {strides = array<i32>} : memref<16x128xf32, #tpu.memory_space<vmem>>, vector<4x128xf32>,
    %c4_10 = arith.constant 4 : index
    %c0_11 = arith.constant 0 : index
    %17 = vector.load %arg5[%c4_10, %c0_11] : memref<16x128xf32, #tpu.memory_space<vmem>>, vector<4x128xf32>
    tpu.vector_store %arg5[%c4_10, %c0_11], %14 {strides = array<i32>} : memref<16x128xf32, #tpu.memory_space<vmem>>, vector<4x128xf32>,
    %c8_12 = arith.constant 8 : index
    %c0_13 = arith.constant 0 : index
    %18 = vector.load %arg5[%c8_12, %c0_13] : memref<16x128xf32, #tpu.memory_space<vmem>>, vector<4x128xf32>
    tpu.vector_store %arg5[%c8_12, %c0_13], %15 {strides = array<i32>} : memref<16x128xf32, #tpu.memory_space<vmem>>, vector<4x128xf32>,
    %c12_14 = arith.constant 12 : index
    %c0_15 = arith.constant 0 : index
    %19 = vector.load %arg5[%c12_14, %c0_15] : memref<16x128xf32, #tpu.memory_space<vmem>>, vector<4x128xf32>
    tpu.vector_store %arg5[%c12_14, %c0_15], %13 {strides = array<i32>} : memref<16x128xf32, #tpu.memory_space<vmem>>, vector<4x128xf32>,
    %c0_16 = arith.constant 0 : index
    %c0_17 = arith.constant 0 : index
    %20 = vector.load %arg5[%c0_16, %c0_17] : memref<16x128xf32, #tpu.memory_space<vmem>>, vector<16x128xf32>
    %cst = arith.constant dense<0.000000e+00> : vector<8x128xf32>
    %21 = tpu.matmul %0, %20, %cst {dimension_numbers = #tpu.dot_dimension_numbers<[1], [0], [0], [1], [0, 0, 1, 1], [], []>} : vector<8x16xf32>, vector<16x128xf32>, vector<8x128xf32> -> vector<8x128xf32>
    %22 = vector.broadcast %1 : vector<8x1xf32> to vector<8x128xf32>
    %23 = arith.addf %21, %22 : vector<8x128xf32>
    %c0_18 = arith.constant 0 : index
    %c0_19 = arith.constant 0 : index
    %24 = vector.load %arg4[%c0_18, %c0_19] : memref<8x128xf32, #tpu.memory_space<vmem>>, vector<8x128xf32>
    tpu.vector_store %arg4[%c0_18, %c0_19], %23 {strides = array<i32>} : memref<8x128xf32, #tpu.memory_space<vmem>>, vector<8x128xf32>,
    return
  }
  func.func @transform_0(%arg0: i32) -> (i32, i32) {
    %c0_i32 = arith.constant 0 : i32
    %c0_i32_0 = arith.constant 0 : i32
    return %c0_i32, %arg0 : i32, i32
  }
  func.func @transform_1(%arg0: i32) -> (i32, i32) {
    %c0_i32 = arith.constant 0 : i32
    %c0_i32_0 = arith.constant 0 : i32
    %c0_i32_1 = arith.constant 0 : i32
    return %c0_i32, %c0_i32_0 : i32, i32
  }
  func.func @transform_2(%arg0: i32) -> (i32, i32) {
    %c0_i32 = arith.constant 0 : i32
    %c0_i32_0 = arith.constant 0 : i32
    %c0_i32_1 = arith.constant 0 : i32
    return %c0_i32, %c0_i32_0 : i32, i32
  }
  func.func @transform_3(%arg0: i32) -> (i32, i32) {
    %c0_i32 = arith.constant 0 : i32
    %c0_i32_0 = arith.constant 0 : i32
    return %c0_i32, %arg0 : i32, i32
  }
}

</mosaic_0001>

<llo_original>
// kernel: tpu_custom_call.1
$region0: #{tpu_custom_call.1}
  #allocation0 [shape = 'u32[]', space=smem, size = 0x4, offset = 0x4, fixed_abs, tag = 'smem constant byte address 0x4 - core index']
  #allocation1 [shape = 'u32[144,128]{1,0:T(1,128)}', space=vmem, size = 0x12000, scoped, tag = 'internal scratch']
  #allocation2 [shape = 'f32[16,128]{1,0:T(8,128)}', space=vmem, size = 0x2000, scoped, tag = 'scratch operand']
  %s0 = inlined_call_operand.hbm [shape: f32[16,256], index: 0, kind: input, shape index: {}]
  %s1 = inlined_call_operand.vmem [shape: f32[8,16], index: 1, kind: input, shape index: {}]
  %s2 = inlined_call_operand.vmem [shape: f32[8,1], index: 2, kind: input, shape index: {}]
  %s3 = inlined_call_operand.hbm [shape: f32[8,256], index: 3, kind: output, shape index: {}]
  %s4 = sld [smem:[#allocation0]]
  $region49: #{tpu_custom_call.1} parent=0
    _
  %s6 = ssub.s32 1, %s4
  %s7 = scalar_select 0, %s6, %s4
  $region1: #{tpu_custom_call.1} parent=0
    #allocation3 [shape = 'u8[16384]{0}', space=vmem, size = 0x4000, scoped, tag = 'input window, operand 0']
    #allocation4 [shape = 's32[2]{0}', space=sflag, size = 0x8, scoped, tag = 'scoped memory for tpu_custom_call.1']
    #allocation5 [shape = 's32[2]{0}', space=sflag, size = 0x8, scoped, tag = 'scoped memory for tpu_custom_call.1']
    #allocation6 [shape = 'u8[8192]{0}', space=vmem, size = 0x2000, scoped, tag = 'output window, operand 0']
    %8 = vsyncpa [#allocation4], 0
    %s9 = scalar_lea.sflag [#allocation4], 1
    %10 = vsyncpa %s9, 0
    %11 = vsyncpa [#allocation5], 0
    %s12 = scalar_lea.sflag [#allocation5], 1
    %13 = vsyncpa %s12, 0
    loop: start=0, step=1, limit=4
    $region2: #{tpu_custom_call.1} parent=1 // loop_pre_header
      _
    $region3: #{tpu_custom_call.1} parent=1 // loop_header
      %s15 = sphi 0, %s19
      %p16 = scmp.ge.s32.totalorder %s15, 4
      %s25 = sphi 0, %s27
      %s28 = sphi 0, %s25
      %s29 = sphi 0, %s28
      %s45 = sphi 0, %s29
      %s49 = sphi 0, %s49
      %s51 = sphi 0, %s49
      %s52 = sphi 0, %s51
      %s66 = sphi 0, %s52
      %s70 = sphi 0, %s70
      %s72 = sphi 0, %s70
      %s73 = sphi 0, %s72
      %s87 = sphi 0, %s73
      %s93 = sphi 0, %s95
      %s96 = sphi 0, %s93
      %s97 = sphi 0, %s96
      %s113 = sphi 0, %s97
    $region4: #{tpu_custom_call.1} parent=1 // loop_header_branch
      %18 = sbr.rel (%p16) target = $region8
    $region5: #{tpu_custom_call.1} parent=1 // loop_body
      %s20 = ssub.s32 %s15, 1
      %s21 = ssub.s32 %s15, 2
      %s22 = sadd.s32 %s15, 1
      %s23 = ssub.s32 %s15, %s22
      %p24 = scmp.eq.s32.totalorder %s23, 0
      %s26 = sadd.s32 %s25, 1
      %s27 = scalar_select %p24, %s25, %s26
      %p30 = pneg %p24
      %p31 = scmp.eq.s32.totalorder %s15, 1
      %p32 = por %p30, %p31
      %p33 = scmp.ne.s32.totalorder %s25, %s28
      %p34 = scmp.eq.s32.totalorder %s15, 0
      %p35 = por %p33, %p34
      %p36 = scmp.ne.s32.totalorder %s25, %s28
      %p37 = scmp.eq.s32.totalorder %s20, 1
      %p38 = por %p36, %p37
      %p39 = scmp.ne.s32.totalorder %s28, %s29
      %p40 = scmp.eq.s32.totalorder %s20, 0
      %p41 = por %p39, %p40
      %p42 = scmp.ne.s32.totalorder %s28, %s29
      %p43 = scmp.eq.s32.totalorder %s21, 1
      %p44 = por %p42, %p43
      %p46 = scmp.ne.s32.totalorder %s29, %s45
      %p47 = scmp.eq.s32.totalorder %s21, 0
      %p48 = por %p46, %p47
      %s50 = sadd.s32 %s49, 1
      %p53 = scmp.eq.s32.totalorder %s15, 1
      %p54 = scmp.ne.s32.totalorder %s49, %s51
      %p55 = scmp.eq.s32.totalorder %s15, 0
      %p56 = por %p54, %p55
      %p57 = scmp.ne.s32.totalorder %s49, %s51
      %p58 = scmp.eq.s32.totalorder %s20, 1
      %p59 = por %p57, %p58
      %p60 = scmp.ne.s32.totalorder %s51, %s52
      %p61 = scmp.eq.s32.totalorder %s20, 0
      %p62 = por %p60, %p61
      %p63 = scmp.ne.s32.totalorder %s51, %s52
      %p64 = scmp.eq.s32.totalorder %s21, 1
      %p65 = por %p63, %p64
      %p67 = scmp.ne.s32.totalorder %s52, %s66
      %p68 = scmp.eq.s32.totalorder %s21, 0
      %p69 = por %p67, %p68
      %s71 = sadd.s32 %s70, 1
      %p74 = scmp.eq.s32.totalorder %s15, 1
      %p75 = scmp.ne.s32.totalorder %s70, %s72
      %p76 = scmp.eq.s32.totalorder %s15, 0
      %p77 = por %p75, %p76
      %p78 = scmp.ne.s32.totalorder %s70, %s72
      %p79 = scmp.eq.s32.totalorder %s20, 1
      %p80 = por %p78, %p79
      %p81 = scmp.ne.s32.totalorder %s72, %s73
      %p82 = scmp.eq.s32.totalorder %s20, 0
      %p83 = por %p81, %p82
      %p84 = scmp.ne.s32.totalorder %s72, %s73
      %p85 = scmp.eq.s32.totalorder %s21, 1
      %p86 = por %p84, %p85
      %p88 = scmp.ne.s32.totalorder %s73, %s87
      %p89 = scmp.eq.s32.totalorder %s21, 0
      %p90 = por %p88, %p89
      %s91 = ssub.s32 %s15, %s22
      %p92 = scmp.eq.s32.totalorder %s91, 0
      %s94 = sadd.s32 %s93, 1
      %s95 = scalar_select %p92, %s93, %s94
      %p98 = pneg %p92
      %p99 = scmp.eq.s32.totalorder %s15, 1
      %p100 = por %p98, %p99
      %p101 = scmp.ne.s32.totalorder %s93, %s96
      %p102 = scmp.eq.s32.totalorder %s15, 0
      %p103 = por %p101, %p102
      %p104 = scmp.ne.s32.totalorder %s93, %s96
      %p105 = scmp.eq.s32.totalorder %s20, 1
      %p106 = por %p104, %p105
      %p107 = scmp.ne.s32.totalorder %s96, %s97
      %p108 = scmp.eq.s32.totalorder %s20, 0
      %p109 = por %p107, %p108
      %p110 = scmp.ne.s32.totalorder %s96, %s97
      %p111 = scmp.eq.s32.totalorder %s21, 1
      %p112 = por %p110, %p111
      %p114 = scmp.ne.s32.totalorder %s97, %s113
      %p115 = scmp.eq.s32.totalorder %s21, 0
      %p116 = por %p114, %p115
      %p117 = scmp.le.s32.totalorder 1, %s15
      %p118 = scmp.lt.s32.totalorder %s15, 3
      %p119 = pnand %p117, %p118
      %p120 = pneg %p119
      // Predicated region
      $region9: #{tpu_custom_call.1} parent=5 // pred_check
        _
      $region10: #{tpu_custom_call.1} parent=5 // pred_check_branch
        %122 = sbr.rel (%p119) target = $region12
      $region11: #{tpu_custom_call.1} parent=5 // pred_region
        %s123 = ssub.s32 %s15, 1
        // Predicated region
        $region13: #{tpu_custom_call.1} parent=11 // pred_check
          %p124 = pneg %p62
        $region14: #{tpu_custom_call.1} parent=11 // pred_check_branch
          %126 = sbr.rel (%p124) target = $region16
        $region15: #{tpu_custom_call.1} parent=11 // pred_region
          _
        $region16: #{tpu_custom_call.1} parent=11 // pred_fallthru
          _
        // Predicated region
        $region17: #{tpu_custom_call.1} parent=11 // pred_check
          %p127 = pneg %p83
        $region18: #{tpu_custom_call.1} parent=11 // pred_check_branch
          %129 = sbr.rel (%p127) target = $region20
        $region19: #{tpu_custom_call.1} parent=11 // pred_region
          _
        $region20: #{tpu_custom_call.1} parent=11 // pred_fallthru
          _
      $region12: #{tpu_custom_call.1} parent=5 // pred_fallthru
        _
      %p130 = scmp.lt.s32.totalorder %s15, 2
      // Predicated region
      $region21: #{tpu_custom_call.1} parent=5 // pred_check
        %p131 = pneg %p130
      $region22: #{tpu_custom_call.1} parent=5 // pred_check_branch
        %133 = sbr.rel (%p131) target = $region24
      $region23: #{tpu_custom_call.1} parent=5 // pred_region
        // Predicated region
        $region25: #{tpu_custom_call.1} parent=23 // pred_check
          %p134 = pneg %p35
        $region26: #{tpu_custom_call.1} parent=23 // pred_check_branch
          %136 = sbr.rel (%p134) target = $region28
        $region27: #{tpu_custom_call.1} parent=23 // pred_region
          %s137 = sand.u32 %s25, 1
          %s138 = scalar_lea.sflag [#allocation4], %s137
          %s139 = sand.u32 %s25, 1
          %s140 = smul.addr %s139, 16
          %s141 = scalar_lea.vmem [#allocation3], %s140
          %s143 = ssub.s32 256, 256
          %144 = vsyncadd %s138, %s143
          %s145 = smul.addr %s15, 128
          %s146 = scalar_lea.hbm %s0, %s145
          %s147 = sshll.u32 %s141, 4
          %s148 = int_to_ptr.vmem [resolvable:$true] %s147
          %153 = dma.hbm_to_vmem [thread:$0]  %s146, 256, %s148, %s138, 256, 128, 8
        $region28: #{tpu_custom_call.1} parent=23 // pred_fallthru
          _
      $region24: #{tpu_custom_call.1} parent=5 // pred_fallthru
        _
      %p154 = scmp.le.s32.totalorder 1, %s15
      %p155 = scmp.lt.s32.totalorder %s15, 3
      %p156 = pnand %p154, %p155
      %p157 = pneg %p156
      // Predicated region
      $region29: #{tpu_custom_call.1} parent=5 // pred_check
        _
      $region30: #{tpu_custom_call.1} parent=5 // pred_check_branch
        %159 = sbr.rel (%p156) target = $region32
      $region31: #{tpu_custom_call.1} parent=5 // pred_region
        %s160 = ssub.s32 %s15, 1
        %s161 = sand.u32 %s28, 1
        %s162 = scalar_lea.sflag [#allocation4], %s161
        %s163 = sand.u32 %s28, 1
        %s164 = smul.addr %s163, 16
        %s165 = scalar_lea.vmem [#allocation3], %s164
        // Predicated region
        $region33: #{tpu_custom_call.1} parent=31 // pred_check
          %p166 = pneg %p41
        $region34: #{tpu_custom_call.1} parent=31 // pred_check_branch
          %168 = sbr.rel (%p166) target = $region36
        $region35: #{tpu_custom_call.1} parent=31 // pred_region
          %169 = dma.done %s162, 256
        $region36: #{tpu_custom_call.1} parent=31 // pred_fallthru
          _
        %s170 = sand.u32 %s28, 1
        %s171 = scalar_lea.sflag [#allocation4], %s170
        %s172 = sand.u32 %s28, 1
        %s173 = smul.addr %s172, 16
        %s174 = scalar_lea.vmem [#allocation3], %s173
        %p175 = pneg %p41
        %p176 = pneg %p38
        %p177 = pneg %p62
        %p178 = pneg %p59
        %p179 = pneg %p83
        %p180 = pneg %p80
        %p181 = pneg %p109
        %p182 = pneg %p106
        %s183 = sand.u32 %s96, 1
        %s184 = scalar_lea.sflag [#allocation5], %s183
        %s185 = sand.u32 %s96, 1
        %s186 = smul.addr %s185, 8
        %s187 = scalar_lea.vmem [#allocation6], %s186
        %v188 = vld [vmem:[%s1] sm:$0xff]
        %v189 = vld [vmem:[%s2] sm:$0xff]
        %v190 = vld [vmem:[%s165] sm:$0xf]
        %v191 = vld [vmem:[%s165 + $0x4] sm:$0xf]
        %v192 = vld [vmem:[%s165 + $0x8] sm:$0xf]
        %v193 = vld [vmem:[%s165 + $0xc] sm:$0xf]
        %v194 = vmin.f32 %v190, %v191
        %v195 = vmax.f32 %v190, %v191
        %v196 = vmin.f32 %v192, %v193
        %v197 = vmax.f32 %v192, %v193
        %v198 = vmin.f32 %v194, %v196
        %v199 = vmax.f32 %v194, %v196
        %v200 = vmin.f32 %v195, %v197
        %v201 = vmax.f32 %v195, %v197
        %v202 = vmin.f32 %v200, %v199
        %v203 = vmax.f32 %v200, %v199
        %204 = vst [vmem:[#allocation2] sm:$0xf] %v198
        %205 = vst [vmem:[#allocation2 + $0x4] sm:$0xf] %v202
        %206 = vst [vmem:[#allocation2 + $0x8] sm:$0xf] %v203
        %207 = vst [vmem:[#allocation2 + $0xc] sm:$0xf] %v201
        %v208 = vld [vmem:[#allocation2] sm:$0xff]
        %v209 = vld [vmem:[#allocation2 + $0x8] sm:$0xff]
        %211 = vset.pattern.permute.xlu0 0
        %212 = vperm.xlu0 %211, %v189
        %v213 = vpop.permute.xlu0 %212
        %vm215 = vcmask 130048
        %v217 = vsel %vm215, %v188, 0
        %219 = vmatprep.subr.mxu0 0.0
        %220 = vmatpush1.msra.mxu0 %v208
        %221 = vmatprep.subr.mxu0 0.0
        %222 = vmatpush1.msra.mxu0 %v209
        %223 = vmatprep.subr.mxu0 0.0
        %224 = vmatpush1.msra.mxu0 0.0
        %225 = vmatprep.subr.mxu0 0.0
        %226 = vmatpush1.msra.mxu0 0.0
        %227 = vmatprep.subr.mxu0 0.0
        %228 = vmatpush1.msra.mxu0 0.0
        %229 = vmatprep.subr.mxu0 0.0
        %230 = vmatpush1.msra.mxu0 0.0
        %231 = vmatprep.subr.mxu0 0.0
        %232 = vmatpush1.msra.mxu0 0.0
        %233 = vmatprep.subr.mxu0 0.0
        %234 = vmatpush1.msra.mxu0 0.0
        %235 = vmatprep.subr.mxu0 0.0
        %236 = vmatpush1.msra.mxu0 0.0
        %237 = vmatprep.subr.mxu0 0.0
        %238 = vmatpush1.msra.mxu0 0.0
        %239 = vmatprep.subr.mxu0 0.0
        %240 = vmatpush1.msra.mxu0 0.0
        %241 = vmatprep.subr.mxu0 0.0
        %242 = vmatpush1.msra.mxu0 0.0
        %243 = vmatprep.subr.mxu0 0.0
        %244 = vmatpush1.msra.mxu0 0.0
        %245 = vmatprep.subr.mxu0 0.0
        %246 = vmatpush1.msra.mxu0 0.0
        %247 = vmatprep.subr.mxu0 0.0
        %248 = vmatpush1.msra.mxu0 0.0
        %249 = vmatprep.subr.mxu0 0.0
        %250 = vmatpush1.msra.mxu0 0.0
        %251 = vmatprep.subr.mxu0 0.0
        %252 = vmatpush1.msra.mxu0 0.0
        %253 = vmatprep.subr.mxu0 0.0
        %254 = vmatpush1.msra.mxu0 0.0
        %255 = vmatprep.subr.mxu0 0.0
        %256 = vmatpush1.msra.mxu0 0.0
        %257 = vmatprep.subr.mxu0 0.0
        %258 = vmatpush1.msra.mxu0 0.0
        %259 = vmatprep.subr.mxu0 0.0
        %260 = vmatpush1.msra.mxu0 0.0
        %261 = vmatprep.subr.mxu0 0.0
        %262 = vmatpush1.msra.mxu0 0.0
        %263 = vmatprep.subr.mxu0 0.0
        %264 = vmatpush1.msra.mxu0 0.0
        %265 = vmatprep.subr.mxu0 0.0
        %266 = vmatpush1.msra.mxu0 0.0
        %267 = vmatprep.subr.mxu0 0.0
        %268 = vmatpush1.msra.mxu0 0.0
        %269 = vmatprep.subr.mxu0 0.0
        %270 = vmatpush1.msra.mxu0 0.0
        %271 = vmatprep.subr.mxu0 0.0
        %272 = vmatpush1.msra.mxu0 0.0
        %273 = vmatprep.subr.mxu0 0.0
        %274 = vmatpush1.msra.mxu0 0.0
        %275 = vmatprep.subr.mxu0 0.0
        %276 = vmatpush1.msra.mxu0 0.0
        %277 = vmatprep.subr.mxu0 0.0
        %278 = vmatpush1.msra.mxu0 0.0
        %279 = vmatprep.subr.mxu0 0.0
        %280 = vmatpush1.msra.mxu0 0.0
        %281 = vmatprep.subr.mxu0 0.0
        %282 = vmatpush1.msra.mxu0 0.0
        %283 = vmatprep.mubr.f32.mxu0 0.0
        %284 = vmatmul.mubr.f32.gmra.mrb[0].mxu0 %v217
        %v285 = vpop.f32.mrb[0].mxu0
        %v286 = vadd.f32 %v213, %v285
        %v287 = vpop.f32.mrb[0].mxu0
        %288 = vdwg.mxu0
        %289 = vst [vmem:[%s187] sm:$0xff] %v286
        %s290 = sand.u32 %s96, 1
        %s291 = scalar_lea.sflag [#allocation5], %s290
        %s292 = sand.u32 %s96, 1
        %s293 = smul.addr %s292, 8
        %s294 = scalar_lea.vmem [#allocation6], %s293
        // Predicated region
        $region37: #{tpu_custom_call.1} parent=31 // pred_check
          %p295 = pneg %p106
        $region38: #{tpu_custom_call.1} parent=31 // pred_check_branch
          %297 = sbr.rel (%p295) target = $region40
        $region39: #{tpu_custom_call.1} parent=31 // pred_region
          %s299 = ssub.s32 128, 128
          %300 = vsyncadd %s291, %s299
          %s301 = smul.addr %s20, 128
          %s302 = scalar_lea.hbm %s3, %s301
          %s304 = sshll.u32 %s294, 4
          %s305 = int_to_ptr.vmem [resolvable:$true] %s304
          %307 = dma.vmem_to_hbm [thread:$0]  %s305, 128, %s302, %s291
        $region40: #{tpu_custom_call.1} parent=31 // pred_fallthru
          _
      $region32: #{tpu_custom_call.1} parent=5 // pred_fallthru
        _
      %p308 = scmp.le.s32.totalorder 2, %s15
      // Predicated region
      $region41: #{tpu_custom_call.1} parent=5 // pred_check
        %p309 = pneg %p308
      $region42: #{tpu_custom_call.1} parent=5 // pred_check_branch
        %311 = sbr.rel (%p309) target = $region44
      $region43: #{tpu_custom_call.1} parent=5 // pred_region
        %s312 = ssub.s32 %s15, 2
        // Predicated region
        $region45: #{tpu_custom_call.1} parent=43 // pred_check
          %p313 = pneg %p112
        $region46: #{tpu_custom_call.1} parent=43 // pred_check_branch
          %315 = sbr.rel (%p313) target = $region48
        $region47: #{tpu_custom_call.1} parent=43 // pred_region
          %s316 = sand.u32 %s97, 1
          %s317 = scalar_lea.sflag [#allocation5], %s316
          %s318 = sand.u32 %s97, 1
          %s319 = smul.addr %s318, 8
          %s320 = scalar_lea.vmem [#allocation6], %s319
          %321 = dma.done %s317, 128
        $region48: #{tpu_custom_call.1} parent=43 // pred_fallthru
          _
      $region44: #{tpu_custom_call.1} parent=5 // pred_fallthru
        _
    $region6: #{tpu_custom_call.1} parent=1 // loop_footer
      %s19 = sadd.s32 1, %s15
    $region7: #{tpu_custom_call.1} parent=1 // loop_footer_branch
      %14 = sbr.rel target = $region3
    $region8: #{tpu_custom_call.1} parent=1 // loop_exit
      _
    %322 = vsyncpa [#allocation4], 1
    %s323 = scalar_lea.sflag [#allocation4], 1
    %324 = vsyncpa %s323, 1
    %325 = vsyncpa [#allocation5], 1
    %s326 = scalar_lea.sflag [#allocation5], 1
    %327 = vsyncpa %s326, 1

</llo_original>
